<compile_context>
chip_gen: v7x
topology: tpu7x:2x2x1
jax: 0.10.0
libtpu: 0.0.40
codegen_flags: <defaults>
</compile_context>

<pallas_src>
import jax
import jax.numpy as jnp
from jax.experimental import pallas as pl
from jax.experimental.pallas import tpu as pltpu

LANE = 128
SUBLANE = 8


def _round_up(n, m):
    return ((n + m - 1) // m) * m


# ---------------------------------------------------------------------------
# Kernel
# ---------------------------------------------------------------------------
def transition_kernel(x_ref, w1_ref, w2_ref, wh_ref, b_ref, out_ref):
    h1_w = w1_ref.shape[1]
    h2_w = w2_ref.shape[1]
    out_w = wh_ref.shape[1]

    b = b_ref[...]                                   # [3, BW] f32 (resident)
    x = x_ref[...].astype(w1_ref.dtype)              # [TB, D_IN] -> bf16

    # fc1 + ReLU
    h1 = jnp.dot(x, w1_ref[...], preferred_element_type=jnp.float32)
    h1 = jnp.maximum(h1 + b[0:1, :h1_w], 0.0).astype(x.dtype)

    # fc2 + ReLU (shared layer)
    h2 = jnp.dot(h1, w2_ref[...], preferred_element_type=jnp.float32)
    h2 = jnp.maximum(h2 + b[1:2, :h2_w], 0.0).astype(x.dtype)

    # fused heads: one lane-dense matmul + one sigmoid + one full-width store
    z = jnp.dot(h2, wh_ref[...], preferred_element_type=jnp.float32)
    z = z + b[2:3, :out_w]
    sig = pl.reciprocal(1.0 + jnp.exp(-z), approx=True)
    out_ref[...] = sig.astype(out_ref.dtype)


# ---------------------------------------------------------------------------
# Parameter packing (pad hidden/head dims to 128, fuse heads, stack biases)
# ---------------------------------------------------------------------------
def pack_params(params, compute_dtype=jnp.bfloat16):
    """params: PyTorch-style Linear params with weights stored [in, out] and
    biases [1, out].  Returns (packed_arrays, meta)."""
    state_size = params["ws"].shape[1]
    mask_size = params["wm"].shape[1]
    d_in = params["w1"].shape[0]
    h1 = params["w1"].shape[1]
    h2 = params["w2"].shape[1]
    head = state_size + 1 + 1 + mask_size

    h1_p = _round_up(h1, LANE)
    h2_p = _round_up(h2, LANE)
    head_p = _round_up(head, LANE)

    def pad2(a, rows, cols):
        return jnp.pad(a, ((0, rows - a.shape[0]), (0, cols - a.shape[1])))

    w1 = pad2(params["w1"], d_in, h1_p)              # [d_in, h1_p]
    w2 = pad2(params["w2"], h1_p, h2_p)              # [h1_p, h2_p]
    wh = pad2(
        jnp.concatenate(
            [params["ws"], params["wr"], params["wd"], params["wm"]], axis=1
        ),
        h2_p, head_p,
    )                                                # [h2_p, head_p]

    bw = max(h1_p, h2_p, head_p)
    b1 = pad2(params["b1"].reshape(1, -1), 1, bw)
    b2 = pad2(params["b2"].reshape(1, -1), 1, bw)
    bh = pad2(
        jnp.concatenate(
            [params["bs"], params["br"], params["bd"], params["bm"]], axis=1
        ).reshape(1, -1),
        1, bw,
    )
    b = jnp.concatenate([b1, b2, bh], axis=0).astype(jnp.float32)  # [3, BW]

    packed = {
        "w1": w1.astype(compute_dtype),
        "w2": w2.astype(compute_dtype),
        "wh": wh.astype(compute_dtype),
        "b": b,
    }
    meta = {
        "d_in": d_in,
        "h1_p": h1_p, "h2_p": h2_p,
        "head_p": head_p, "bias_w": bw,
        "state_size": state_size, "mask_size": mask_size,
    }
    return packed, meta


# ---------------------------------------------------------------------------
# Wrapper
# ---------------------------------------------------------------------------
def transition_forward(x, packed, meta, *, block_b=1024):
    """x: [B, state_size + action_size]. Returns (state, reward, done, mask)."""
    B, d_in = x.shape
    assert d_in == meta["d_in"]
    h1_p, h2_p = meta["h1_p"], meta["h2_p"]
    head_p, bias_w = meta["head_p"], meta["bias_w"]

    # batch tile: multiple of 8 sublanes; pad batch only if needed
    tb = _round_up(min(block_b, _round_up(B, SUBLANE)), SUBLANE)
    b_pad = _round_up(B, tb)
    xp = x if b_pad == B else jnp.pad(x, ((0, b_pad - B), (0, 0)))

    grid = (b_pad // tb,)

    out = pl.pallas_call(
        transition_kernel,
        out_shape=jax.ShapeDtypeStruct((b_pad, head_p), jnp.float32),
        grid=grid,
        in_specs=[
            pl.BlockSpec((tb, d_in), lambda i: (i, 0)),       # x: batch-tiled
            pl.BlockSpec((d_in, h1_p), lambda i: (0, 0)),     # w1: resident
            pl.BlockSpec((h1_p, h2_p), lambda i: (0, 0)),     # w2: resident
            pl.BlockSpec((h2_p, head_p), lambda i: (0, 0)),   # fused heads
            pl.BlockSpec((3, bias_w), lambda i: (0, 0)),      # stacked biases
        ],
        out_specs=pl.BlockSpec((tb, head_p), lambda i: (i, 0)),
        compiler_params=pltpu.CompilerParams(
            dimension_semantics=("parallel",),
            vmem_limit_bytes=32 * 1024 * 1024,
        ),
    )(xp, packed["w1"], packed["w2"], packed["wh"], packed["b"])

    s = meta["state_size"]
    m = meta["mask_size"]
    out = out[:B]
    state = out[:, :s]
    reward = out[:, s:s + 1]
    done = out[:, s + 1:s + 2]
    mask = out[:, s + 2:s + 2 + m]
    return state, reward, done, mask


# ---------------------------------------------------------------------------
# Init + pure-JAX reference (mirrors kernel precision: bf16 matmul inputs,
# f32 accumulation, f32 bias / sigmoid epilogue)
# ---------------------------------------------------------------------------
def init_params(key, state_size, action_size, mask_size, layers):
    dims = [
        ("w1", "b1", state_size + action_size, layers[0]),
        ("w2", "b2", layers[0], layers[1]),
        ("ws", "bs", layers[1], state_size),
        ("wr", "br", layers[1], 1),
        ("wd", "bd", layers[1], 1),
        ("wm", "bm", layers[1], mask_size),
    ]
    params = {}
    for wname, bname, fan_in, fan_out in dims:
        key, kw, kb = jax.random.split(key, 3)
        bound = 1.0 / jnp.sqrt(fan_in)
        params[wname] = jax.random.uniform(
            kw, (fan_in, fan_out), jnp.float32, -bound, bound)
        params[bname] = jax.random.uniform(
            kb, (1, fan_out), jnp.float32, -bound, bound)
    return params


def transition_ref(x, params, compute_dtype=jnp.bfloat16):
    hp = jax.lax.Precision.HIGHEST

    def dot(a, w):
        return jnp.dot(a.astype(compute_dtype).astype(jnp.float32),
                       w.astype(compute_dtype).astype(jnp.float32),
                       precision=hp)

    h1 = jnp.maximum(dot(x, params["w1"]) + params["b1"], 0.0)
    h2 = jnp.maximum(dot(h1, params["w2"]) + params["b2"], 0.0)

    def head(w, b):
        return jax.nn.sigmoid(dot(h2, w) + b)

    return (head(params["ws"], params["bs"]),
            head(params["wr"], params["br"]),
            head(params["wd"], params["bd"]),
            head(params["wm"], params["bm"]))


if __name__ == "__main__":
    state_size, action_size, mask_size = 32, 16, 8
    layers = [64, 64]
    batch = 16

    key = jax.random.PRNGKey(0)
    key, kx = jax.random.split(key)
    x = jax.random.normal(kx, (batch, state_size + action_size), jnp.float32)
    params = init_params(key, state_size, action_size, mask_size, layers)

    packed, meta = pack_params(params, compute_dtype=jnp.bfloat16)
    outs = transition_forward(x, packed, meta, block_b=1024)
    outs = jax.block_until_ready(outs)

    refs = transition_ref(x, params, compute_dtype=jnp.bfloat16)
    names = ("state", "reward", "done", "mask")
    for name, o, r in zip(names, outs, refs):
        assert o.shape == r.shape, (name, o.shape, r.shape)
        assert o.dtype == jnp.float32, (name, o.dtype)
        assert jnp.allclose(o, r, atol=2e-3, rtol=2e-3), name

    print("KERNEL_OK")
</pallas_src>

<mosaic_0001>
module attributes {stable_mosaic.version = 11 : i64} {
  func.func @transition_kernel(%arg0: i32, %arg1: memref<16x48xf32, #tpu.memory_space<vmem>>, %arg2: memref<48x128xbf16, #tpu.memory_space<vmem>>, %arg3: memref<128x128xbf16, #tpu.memory_space<vmem>>, %arg4: memref<128x128xbf16, #tpu.memory_space<vmem>>, %arg5: memref<3x128xf32, #tpu.memory_space<vmem>>, %arg6: memref<16x128xf32, #tpu.memory_space<vmem>>) attributes {dimension_semantics = [#tpu.dimension_semantics<parallel>], iteration_bounds = array<i64: 1>, scalar_prefetch = 0 : i64, scratch_operands = 0 : i64, tpu.core_type = #tpu.core_type<tc>, window_params = [{transform_indices = @transform_0, window_bounds = array<i64: 16, 48>}, {pipeline_mode = #tpu.pipeline_mode<synchronous>, transform_indices = @transform_1, window_bounds = array<i64: 48, 128>}, {pipeline_mode = #tpu.pipeline_mode<synchronous>, transform_indices = @transform_2, window_bounds = array<i64: 128, 128>}, {pipeline_mode = #tpu.pipeline_mode<synchronous>, transform_indices = @transform_3, window_bounds = array<i64: 128, 128>}, {pipeline_mode = #tpu.pipeline_mode<synchronous>, transform_indices = @transform_4, window_bounds = array<i64: 3, 128>}, {transform_indices = @transform_5, window_bounds = array<i64: 16, 128>}]} {
    %c0 = arith.constant 0 : index
    %c0_0 = arith.constant 0 : index
    %0 = vector.load %arg5[%c0, %c0_0] : memref<3x128xf32, #tpu.memory_space<vmem>>, vector<3x128xf32>
    %c0_1 = arith.constant 0 : index
    %c0_2 = arith.constant 0 : index
    %1 = vector.load %arg1[%c0_1, %c0_2] : memref<16x48xf32, #tpu.memory_space<vmem>>, vector<16x48xf32>
    %2 = arith.truncf %1 : vector<16x48xf32> to vector<16x48xbf16>
    %c0_3 = arith.constant 0 : index
    %c0_4 = arith.constant 0 : index
    %3 = vector.load %arg2[%c0_3, %c0_4] : memref<48x128xbf16, #tpu.memory_space<vmem>>, vector<48x128xbf16>
    %cst = arith.constant dense<0.000000e+00> : vector<16x128xf32>
    %4 = tpu.matmul %2, %3, %cst {dimension_numbers = #tpu.dot_dimension_numbers<[1], [0], [0], [1], [0, 0, 1, 1], [], []>} : vector<16x48xbf16>, vector<48x128xbf16>, vector<16x128xf32> -> vector<16x128xf32>
    %5 = vector.extract_strided_slice %0 {offsets = [0, 0], sizes = [1, 128], strides = [1, 1]} : vector<3x128xf32> to vector<1x128xf32>
    %6 = vector.broadcast %5 : vector<1x128xf32> to vector<16x128xf32>
    %7 = arith.addf %4, %6 : vector<16x128xf32>
    %cst_5 = arith.constant 0.000000e+00 : f32
    %8 = vector.broadcast %cst_5 : f32 to vector<16x128xf32>
    %9 = arith.maximumf %7, %8 : vector<16x128xf32>
    %10 = arith.truncf %9 : vector<16x128xf32> to vector<16x128xbf16>
    %c0_6 = arith.constant 0 : index
    %c0_7 = arith.constant 0 : index
    %11 = vector.load %arg3[%c0_6, %c0_7] : memref<128x128xbf16, #tpu.memory_space<vmem>>, vector<128x128xbf16>
    %cst_8 = arith.constant dense<0.000000e+00> : vector<16x128xf32>
    %12 = tpu.matmul %10, %11, %cst_8 {dimension_numbers = #tpu.dot_dimension_numbers<[1], [0], [0], [1], [0, 0, 1, 1], [], []>} : vector<16x128xbf16>, vector<128x128xbf16>, vector<16x128xf32> -> vector<16x128xf32>
    %13 = vector.extract_strided_slice %0 {offsets = [1, 0], sizes = [1, 128], strides = [1, 1]} : vector<3x128xf32> to vector<1x128xf32>
    %14 = vector.broadcast %13 : vector<1x128xf32> to vector<16x128xf32>
    %15 = arith.addf %12, %14 : vector<16x128xf32>
    %cst_9 = arith.constant 0.000000e+00 : f32
    %16 = vector.broadcast %cst_9 : f32 to vector<16x128xf32>
    %17 = arith.maximumf %15, %16 : vector<16x128xf32>
    %18 = arith.truncf %17 : vector<16x128xf32> to vector<16x128xbf16>
    %c0_10 = arith.constant 0 : index
    %c0_11 = arith.constant 0 : index
    %19 = vector.load %arg4[%c0_10, %c0_11] : memref<128x128xbf16, #tpu.memory_space<vmem>>, vector<128x128xbf16>
    %cst_12 = arith.constant dense<0.000000e+00> : vector<16x128xf32>
    %20 = tpu.matmul %18, %19, %cst_12 {dimension_numbers = #tpu.dot_dimension_numbers<[1], [0], [0], [1], [0, 0, 1, 1], [], []>} : vector<16x128xbf16>, vector<128x128xbf16>, vector<16x128xf32> -> vector<16x128xf32>
    %21 = vector.extract_strided_slice %0 {offsets = [2, 0], sizes = [1, 128], strides = [1, 1]} : vector<3x128xf32> to vector<1x128xf32>
    %22 = vector.broadcast %21 : vector<1x128xf32> to vector<16x128xf32>
    %23 = arith.addf %20, %22 : vector<16x128xf32>
    %cst_13 = arith.constant 0.000000e+00 : f32
    %24 = vector.broadcast %cst_13 : f32 to vector<16x128xf32>
    %25 = arith.subf %24, %23 : vector<16x128xf32>
    %26 = math.exp %25 : vector<16x128xf32>
    %cst_14 = arith.constant 1.000000e+00 : f32
    %27 = vector.broadcast %cst_14 : f32 to vector<16x128xf32>
    %28 = arith.addf %27, %26 : vector<16x128xf32>
    %29 = tpu.reciprocal %28 {approx = true} : vector<16x128xf32> -> vector<16x128xf32>
    %c0_15 = arith.constant 0 : index
    %c0_16 = arith.constant 0 : index
    %30 = vector.load %arg6[%c0_15, %c0_16] : memref<16x128xf32, #tpu.memory_space<vmem>>, vector<16x128xf32>
    tpu.vector_store %arg6[%c0_15, %c0_16], %29 {strides = array<i32>} : memref<16x128xf32, #tpu.memory_space<vmem>>, vector<16x128xf32>,
    return
  }
  func.func @transform_0(%arg0: i32) -> (i32, i32) {
    %c0_i32 = arith.constant 0 : i32
    %c0_i32_0 = arith.constant 0 : i32
    return %arg0, %c0_i32 : i32, i32
  }
  func.func @transform_1(%arg0: i32) -> (i32, i32) {
    %c0_i32 = arith.constant 0 : i32
    %c0_i32_0 = arith.constant 0 : i32
    %c0_i32_1 = arith.constant 0 : i32
    return %c0_i32, %c0_i32_0 : i32, i32
  }
  func.func @transform_2(%arg0: i32) -> (i32, i32) {
    %c0_i32 = arith.constant 0 : i32
    %c0_i32_0 = arith.constant 0 : i32
    %c0_i32_1 = arith.constant 0 : i32
    return %c0_i32, %c0_i32_0 : i32, i32
  }
  func.func @transform_3(%arg0: i32) -> (i32, i32) {
    %c0_i32 = arith.constant 0 : i32
    %c0_i32_0 = arith.constant 0 : i32
    %c0_i32_1 = arith.constant 0 : i32
    return %c0_i32, %c0_i32_0 : i32, i32
  }
  func.func @transform_4(%arg0: i32) -> (i32, i32) {
    %c0_i32 = arith.constant 0 : i32
    %c0_i32_0 = arith.constant 0 : i32
    %c0_i32_1 = arith.constant 0 : i32
    return %c0_i32, %c0_i32_0 : i32, i32
  }
  func.func @transform_5(%arg0: i32) -> (i32, i32) {
    %c0_i32 = arith.constant 0 : i32
    %c0_i32_0 = arith.constant 0 : i32
    return %arg0, %c0_i32 : i32, i32
  }
}

</mosaic_0001>

<llo_original>
// kernel: tpu_custom_call.1
$region0: #{tpu_custom_call.1}
  #allocation0 [shape = 'u32[]', space=smem, size = 0x4, offset = 0x4, fixed_abs, tag = 'smem constant byte address 0x4 - core index']
  #allocation1 [shape = 'u32[144,128]{1,0:T(1,128)}', space=vmem, size = 0x12000, scoped, tag = 'internal scratch']
  %s0 = inlined_call_operand.hbm [shape: f32[16,48], index: 0, kind: input, shape index: {}]
  %s1 = inlined_call_operand.hbm [shape: bf16[48,128], index: 1, kind: input, shape index: {}]
  %s2 = inlined_call_operand.hbm [shape: bf16[128,128], index: 2, kind: input, shape index: {}]
  %s3 = inlined_call_operand.hbm [shape: bf16[128,128], index: 3, kind: input, shape index: {}]
  %s4 = inlined_call_operand.vmem [shape: f32[3,128], index: 4, kind: input, shape index: {}]
  %s5 = inlined_call_operand.hbm [shape: f32[16,128], index: 5, kind: output, shape index: {}]
  %s6 = sld [smem:[#allocation0]]
  $region46: #{tpu_custom_call.1} parent=0
    _
  %s8 = ssub.s32 1, %s6
  %s9 = scalar_select 0, %s8, %s6
  $region1: #{tpu_custom_call.1} parent=0
    #allocation2 [shape = 'u8[8192]{0}', space=vmem, size = 0x2000, scoped, tag = 'input window, operand 0, single buffered']
    #allocation3 [shape = 's32[1]{0}', space=sflag, size = 0x4, scoped, tag = 'scoped memory for tpu_custom_call.1']
    #allocation4 [shape = 's32[1]{0}', space=sflag, size = 0x4, scoped, tag = 'scoped memory for tpu_custom_call.1']
    #allocation5 [shape = 'u8[12288]{0}', space=vmem, size = 0x3000, scoped, tag = 'input window, operand 1, single buffered']
    #allocation6 [shape = 's32[1]{0}', space=sflag, size = 0x4, scoped, tag = 'scoped memory for tpu_custom_call.1']
    #allocation7 [shape = 'u8[32768]{0}', space=vmem, size = 0x8000, scoped, tag = 'input window, operand 2, single buffered']
    #allocation8 [shape = 'u8[32768]{0}', space=vmem, size = 0x8000, scoped, tag = 'input window, operand 3, single buffered']
    #allocation9 [shape = 's32[1]{0}', space=sflag, size = 0x4, scoped, tag = 'scoped memory for tpu_custom_call.1']
    #allocation10 [shape = 'u8[8192]{0}', space=vmem, size = 0x2000, scoped, tag = 'output window, operand 0, single buffered']
    %10 = vsyncpa [#allocation3], 0
    %11 = vsyncpa [#allocation6], 0
    %12 = vsyncpa [#allocation9], 0
    %13 = vsyncpa [#allocation4], 0
    // Predicated region
    $region2: #{tpu_custom_call.1} parent=1 // pred_check
      _
    $region3: #{tpu_custom_call.1} parent=1 // pred_check_branch
      %15 = sbr.rel (0) target = $region5
    $region4: #{tpu_custom_call.1} parent=1 // pred_region
      %s17 = ssub.s32 256, 256
      %18 = vsyncadd [#allocation3], %s17
      %s19 = sshll.u32 [#allocation2], 4
      %s20 = int_to_ptr.vmem [resolvable:$true] %s19
      %25 = dma.hbm_to_vmem [thread:$0]  %s0, 256, %s20, [#allocation3], 128, 128, 8
    $region5: #{tpu_custom_call.1} parent=1 // pred_fallthru
      _
    // Predicated region
    $region6: #{tpu_custom_call.1} parent=1 // pred_check
      _
    $region7: #{tpu_custom_call.1} parent=1 // pred_check_branch
      %27 = sbr.rel (0) target = $region9
    $region8: #{tpu_custom_call.1} parent=1 // pred_region
      %s29 = ssub.s32 384, 384
      %30 = vsyncadd [#allocation6], %s29
      %s31 = sshll.u32 [#allocation5], 4
      %s32 = int_to_ptr.vmem [resolvable:$true] %s31
      %37 = dma.hbm_to_vmem [thread:$0]  %s1, 384, %s32, [#allocation6], 64, 64, 4
    $region9: #{tpu_custom_call.1} parent=1 // pred_fallthru
      _
    // Predicated region
    $region10: #{tpu_custom_call.1} parent=1 // pred_check
      _
    $region11: #{tpu_custom_call.1} parent=1 // pred_check_branch
      %39 = sbr.rel (0) target = $region13
    $region12: #{tpu_custom_call.1} parent=1 // pred_region
      %s41 = ssub.s32 1024, 1024
      %42 = vsyncadd [#allocation6], %s41
      %s43 = sshll.u32 [#allocation7], 4
      %s44 = int_to_ptr.vmem [resolvable:$true] %s43
      %49 = dma.hbm_to_vmem [thread:$0]  %s2, 1024, %s44, [#allocation6], 64, 64, 4
    $region13: #{tpu_custom_call.1} parent=1 // pred_fallthru
      _
    // Predicated region
    $region14: #{tpu_custom_call.1} parent=1 // pred_check
      _
    $region15: #{tpu_custom_call.1} parent=1 // pred_check_branch
      %51 = sbr.rel (0) target = $region17
    $region16: #{tpu_custom_call.1} parent=1 // pred_region
      %s53 = ssub.s32 1024, 1024
      %54 = vsyncadd [#allocation9], %s53
      %s55 = sshll.u32 [#allocation8], 4
      %s56 = int_to_ptr.vmem [resolvable:$true] %s55
      %61 = dma.hbm_to_vmem [thread:$0]  %s3, 1024, %s56, [#allocation9], 64, 64, 4
    $region17: #{tpu_custom_call.1} parent=1 // pred_fallthru
      _
    // Predicated region
    $region18: #{tpu_custom_call.1} parent=1 // pred_check
      _
    $region19: #{tpu_custom_call.1} parent=1 // pred_check_branch
      %63 = sbr.rel (0) target = $region21
    $region20: #{tpu_custom_call.1} parent=1 // pred_region
      _
    $region21: #{tpu_custom_call.1} parent=1 // pred_fallthru
      _
    // Predicated region
    $region22: #{tpu_custom_call.1} parent=1 // pred_check
      _
    $region23: #{tpu_custom_call.1} parent=1 // pred_check_branch
      %65 = sbr.rel (0) target = $region25
    $region24: #{tpu_custom_call.1} parent=1 // pred_region
      %66 = dma.done [#allocation3], 256
    $region25: #{tpu_custom_call.1} parent=1 // pred_fallthru
      _
    // Predicated region
    $region26: #{tpu_custom_call.1} parent=1 // pred_check
      _
    $region27: #{tpu_custom_call.1} parent=1 // pred_check_branch
      %68 = sbr.rel (0) target = $region29
    $region28: #{tpu_custom_call.1} parent=1 // pred_region
      %69 = dma.done [#allocation6], 384
    $region29: #{tpu_custom_call.1} parent=1 // pred_fallthru
      _
    // Predicated region
    $region30: #{tpu_custom_call.1} parent=1 // pred_check
      _
    $region31: #{tpu_custom_call.1} parent=1 // pred_check_branch
      %71 = sbr.rel (0) target = $region33
    $region32: #{tpu_custom_call.1} parent=1 // pred_region
      %72 = dma.done [#allocation6], 1024
    $region33: #{tpu_custom_call.1} parent=1 // pred_fallthru
      _
    // Predicated region
    $region34: #{tpu_custom_call.1} parent=1 // pred_check
      _
    $region35: #{tpu_custom_call.1} parent=1 // pred_check_branch
      %74 = sbr.rel (0) target = $region37
    $region36: #{tpu_custom_call.1} parent=1 // pred_region
      %75 = dma.done [#allocation9], 1024
    $region37: #{tpu_custom_call.1} parent=1 // pred_fallthru
      _
    %v77 = vld [vmem:[%s4] sm:$0x7]
    %v78 = vld [vmem:[#allocation2] sm:$0xff]
    %v79 = vld [vmem:[#allocation2 + $0x8] sm:$0xff]
    %v80 = vpack.c.bf16 %v79, %v78
    %v81 = vld [vmem:[#allocation5] sm:$0xf]
    %v82 = vld [vmem:[#allocation5 + $0x4] sm:$0xf]
    %v83 = vld [vmem:[#allocation5 + $0x8] sm:$0xf]
    %v84 = vld [vmem:[#allocation5 + $0xc] sm:$0xf]
    %v85 = vld [vmem:[#allocation5 + $0x10] sm:$0xf]
    %v86 = vld [vmem:[#allocation5 + $0x14] sm:$0xf]
    %v87 = vlaneseq
    %v88 = vshrl.u32 %v87, 7
    %v89 = vsub.s32 0, %v88
    %v90 = vrot.slane %v77, %v89
    %v97 = vunpack.c.l.b16 %v81
    %v98 = vunpack.c.l.b16 %v82
    %v99 = vunpack.c.l.b16 %v83
    %v100 = vunpack.c.l.b16 %v84
    %v101 = vunpack.c.l.b16 %v85
    %v102 = vunpack.c.l.b16 %v86
    %v103 = vpack.c.b16 %v98, %v97
    %v104 = vpack.c.b16 %v100, %v99
    %v105 = vpack.c.b16 %v102, %v101
    %vm109 = vcmask 392192
    %v111 = vsel %vm109, %v80, 0
    %113 = vmatprep.subr.bf16.mxu0 0
    %114 = vmatpush1.bf16.msra.mxu0 %v103
    %115 = vmatprep.subr.bf16.mxu0 0
    %116 = vmatpush1.bf16.msra.mxu0 %v104
    %117 = vmatprep.subr.bf16.mxu0 0
    %118 = vmatpush1.bf16.msra.mxu0 %v105
    %119 = vmatprep.subr.bf16.mxu0 0
    %120 = vmatpush1.bf16.msra.mxu0 0
    %121 = vmatprep.subr.bf16.mxu0 0
    %122 = vmatpush1.bf16.msra.mxu0 0
    %123 = vmatprep.subr.bf16.mxu0 0
    %124 = vmatpush1.bf16.msra.mxu0 0
    %125 = vmatprep.subr.bf16.mxu0 0
    %126 = vmatpush1.bf16.msra.mxu0 0
    %127 = vmatprep.subr.bf16.mxu0 0
    %128 = vmatpush1.bf16.msra.mxu0 0
    %129 = vmatprep.subr.bf16.mxu0 0
    %130 = vmatpush1.bf16.msra.mxu0 0
    %131 = vmatprep.subr.bf16.mxu0 0
    %132 = vmatpush1.bf16.msra.mxu0 0
    %133 = vmatprep.subr.bf16.mxu0 0
    %134 = vmatpush1.bf16.msra.mxu0 0
    %135 = vmatprep.subr.bf16.mxu0 0
    %136 = vmatpush1.bf16.msra.mxu0 0
    %137 = vmatprep.subr.bf16.mxu0 0
    %138 = vmatpush1.bf16.msra.mxu0 0
    %139 = vmatprep.subr.bf16.mxu0 0
    %140 = vmatpush1.bf16.msra.mxu0 0
    %141 = vmatprep.subr.bf16.mxu0 0
    %142 = vmatpush1.bf16.msra.mxu0 0
    %143 = vmatprep.subr.bf16.mxu0 0
    %144 = vmatpush1.bf16.msra.mxu0 0
    %145 = vmatprep.mubr.bf16.mxu0 0
    %146 = vmatmul.mubr.bf16.gmra.mrb[0].mxu0 %v111
    %v147 = vpop.f32.mrb[0].mxu0
    %v148 = vadd.f32 %v90, %v147
    %v149 = vpop.f32.mrb[0].mxu0
    %v150 = vpop.f32.mrb[0].mxu0
    %v151 = vadd.f32 %v90, %v150
    %v152 = vpop.f32.mrb[0].mxu0
    %153 = vdwg.mxu0
    %v154 = vmax.f32 %v148, 0.0
    %v155 = vmax.f32 %v151, 0.0
    %v156 = vpack.c.bf16 %v155, %v154
    %v157 = vld [vmem:[#allocation7] sm:$0xf]
    %v158 = vld [vmem:[#allocation7 + $0x4] sm:$0xf]
    %v159 = vld [vmem:[#allocation7 + $0x8] sm:$0xf]
    %v160 = vld [vmem:[#allocation7 + $0xc] sm:$0xf]
    %v161 = vld [vmem:[#allocation7 + $0x10] sm:$0xf]
    %v162 = vld [vmem:[#allocation7 + $0x14] sm:$0xf]
    %v163 = vld [vmem:[#allocation7 + $0x18] sm:$0xf]
    %v164 = vld [vmem:[#allocation7 + $0x1c] sm:$0xf]
    %v165 = vld [vmem:[#allocation7 + $0x20] sm:$0xf]
    %v166 = vld [vmem:[#allocation7 + $0x24] sm:$0xf]
    %v167 = vld [vmem:[#allocation7 + $0x28] sm:$0xf]
    %v168 = vld [vmem:[#allocation7 + $0x2c] sm:$0xf]
    %v169 = vld [vmem:[#allocation7 + $0x30] sm:$0xf]
    %v170 = vld [vmem:[#allocation7 + $0x34] sm:$0xf]
    %v171 = vld [vmem:[#allocation7 + $0x38] sm:$0xf]
    %v172 = vld [vmem:[#allocation7 + $0x3c] sm:$0xf]
    %v173 = vlaneseq
    %v174 = vshrl.u32 %v173, 7
    %v175 = vsub.s32 1, %v174
    %v176 = vrot.slane %v77, %v175
    %v193 = vunpack.c.l.b16 %v157
    %v194 = vunpack.c.l.b16 %v158
    %v195 = vunpack.c.l.b16 %v159
    %v196 = vunpack.c.l.b16 %v160
    %v197 = vunpack.c.l.b16 %v161
    %v198 = vunpack.c.l.b16 %v162
    %v199 = vunpack.c.l.b16 %v163
    %v200 = vunpack.c.l.b16 %v164
    %v201 = vunpack.c.l.b16 %v165
    %v202 = vunpack.c.l.b16 %v166
    %v203 = vunpack.c.l.b16 %v167
    %v204 = vunpack.c.l.b16 %v168
    %v205 = vunpack.c.l.b16 %v169
    %v206 = vunpack.c.l.b16 %v170
    %v207 = vunpack.c.l.b16 %v171
    %v208 = vunpack.c.l.b16 %v172
    %v209 = vpack.c.b16 %v194, %v193
    %v210 = vpack.c.b16 %v196, %v195
    %v211 = vpack.c.b16 %v198, %v197
    %v212 = vpack.c.b16 %v200, %v199
    %v213 = vpack.c.b16 %v202, %v201
    %v214 = vpack.c.b16 %v204, %v203
    %v215 = vpack.c.b16 %v206, %v205
    %v216 = vpack.c.b16 %v208, %v207
    %225 = vmatprep.subr.bf16.mxu0 0
    %226 = vmatpush1.bf16.msra.mxu0 %v209
    %227 = vmatprep.subr.bf16.mxu0 0
    %228 = vmatpush1.bf16.msra.mxu0 %v210
    %229 = vmatprep.subr.bf16.mxu0 0
    %230 = vmatpush1.bf16.msra.mxu0 %v211
    %231 = vmatprep.subr.bf16.mxu0 0
    %232 = vmatpush1.bf16.msra.mxu0 %v212
    %233 = vmatprep.subr.bf16.mxu0 0
    %234 = vmatpush1.bf16.msra.mxu0 %v213
    %235 = vmatprep.subr.bf16.mxu0 0
    %236 = vmatpush1.bf16.msra.mxu0 %v214
    %237 = vmatprep.subr.bf16.mxu0 0
    %238 = vmatpush1.bf16.msra.mxu0 %v215
    %239 = vmatprep.subr.bf16.mxu0 0
    %240 = vmatpush1.bf16.msra.mxu0 %v216
    %241 = vmatprep.subr.bf16.mxu0 0
    %242 = vmatpush1.bf16.msra.mxu0 0
    %243 = vmatprep.subr.bf16.mxu0 0
    %244 = vmatpush1.bf16.msra.mxu0 0
    %245 = vmatprep.subr.bf16.mxu0 0
    %246 = vmatpush1.bf16.msra.mxu0 0
    %247 = vmatprep.subr.bf16.mxu0 0
    %248 = vmatpush1.bf16.msra.mxu0 0
    %249 = vmatprep.subr.bf16.mxu0 0
    %250 = vmatpush1.bf16.msra.mxu0 0
    %251 = vmatprep.subr.bf16.mxu0 0
    %252 = vmatpush1.bf16.msra.mxu0 0
    %253 = vmatprep.subr.bf16.mxu0 0
    %254 = vmatpush1.bf16.msra.mxu0 0
    %255 = vmatprep.subr.bf16.mxu0 0
    %256 = vmatpush1.bf16.msra.mxu0 0
    %257 = vmatprep.mubr.bf16.mxu0 0
    %258 = vmatmul.mubr.bf16.gmra.mrb[0].mxu0 %v156
    %v259 = vpop.f32.mrb[0].mxu0
    %v260 = vadd.f32 %v176, %v259
    %v261 = vpop.f32.mrb[0].mxu0
    %v262 = vpop.f32.mrb[0].mxu0
    %v263 = vadd.f32 %v176, %v262
    %v264 = vpop.f32.mrb[0].mxu0
    %265 = vdwg.mxu0
    %v266 = vmax.f32 %v260, 0.0
    %v267 = vmax.f32 %v263, 0.0
    %v268 = vpack.c.bf16 %v267, %v266
    %v269 = vld [vmem:[#allocation8] sm:$0xf]
    %v270 = vld [vmem:[#allocation8 + $0x4] sm:$0xf]
    %v271 = vld [vmem:[#allocation8 + $0x8] sm:$0xf]
    %v272 = vld [vmem:[#allocation8 + $0xc] sm:$0xf]
    %v273 = vld [vmem:[#allocation8 + $0x10] sm:$0xf]
    %v274 = vld [vmem:[#allocation8 + $0x14] sm:$0xf]
    %v275 = vld [vmem:[#allocation8 + $0x18] sm:$0xf]
    %v276 = vld [vmem:[#allocation8 + $0x1c] sm:$0xf]
    %v277 = vld [vmem:[#allocation8 + $0x20] sm:$0xf]
    %v278 = vld [vmem:[#allocation8 + $0x24] sm:$0xf]
    %v279 = vld [vmem:[#allocation8 + $0x28] sm:$0xf]
    %v280 = vld [vmem:[#allocation8 + $0x2c] sm:$0xf]
    %v281 = vld [vmem:[#allocation8 + $0x30] sm:$0xf]
    %v282 = vld [vmem:[#allocation8 + $0x34] sm:$0xf]
    %v283 = vld [vmem:[#allocation8 + $0x38] sm:$0xf]
    %v284 = vld [vmem:[#allocation8 + $0x3c] sm:$0xf]
    %v285 = vlaneseq
    %v286 = vshrl.u32 %v285, 7
    %v287 = vsub.s32 2, %v286
    %v288 = vrot.slane %v77, %v287
    %v305 = vunpack.c.l.b16 %v269
    %v306 = vunpack.c.l.b16 %v270
    %v307 = vunpack.c.l.b16 %v271
    %v308 = vunpack.c.l.b16 %v272
    %v309 = vunpack.c.l.b16 %v273
    %v310 = vunpack.c.l.b16 %v274
    %v311 = vunpack.c.l.b16 %v275
    %v312 = vunpack.c.l.b16 %v276
    %v313 = vunpack.c.l.b16 %v277
    %v314 = vunpack.c.l.b16 %v278
    %v315 = vunpack.c.l.b16 %v279
    %v316 = vunpack.c.l.b16 %v280
    %v317 = vunpack.c.l.b16 %v281
    %v318 = vunpack.c.l.b16 %v282
    %v319 = vunpack.c.l.b16 %v283
    %v320 = vunpack.c.l.b16 %v284
    %v321 = vpack.c.b16 %v306, %v305
    %v322 = vpack.c.b16 %v308, %v307
    %v323 = vpack.c.b16 %v310, %v309
    %v324 = vpack.c.b16 %v312, %v311
    %v325 = vpack.c.b16 %v314, %v313
    %v326 = vpack.c.b16 %v316, %v315
    %v327 = vpack.c.b16 %v318, %v317
    %v328 = vpack.c.b16 %v320, %v319
    %337 = vmatprep.subr.bf16.mxu0 0
    %338 = vmatpush1.bf16.msra.mxu0 %v321
    %339 = vmatprep.subr.bf16.mxu0 0
    %340 = vmatpush1.bf16.msra.mxu0 %v322
    %341 = vmatprep.subr.bf16.mxu0 0
    %342 = vmatpush1.bf16.msra.mxu0 %v323
    %343 = vmatprep.subr.bf16.mxu0 0
    %344 = vmatpush1.bf16.msra.mxu0 %v324
    %345 = vmatprep.subr.bf16.mxu0 0
    %346 = vmatpush1.bf16.msra.mxu0 %v325
    %347 = vmatprep.subr.bf16.mxu0 0
    %348 = vmatpush1.bf16.msra.mxu0 %v326
    %349 = vmatprep.subr.bf16.mxu0 0
    %350 = vmatpush1.bf16.msra.mxu0 %v327
    %351 = vmatprep.subr.bf16.mxu0 0
    %352 = vmatpush1.bf16.msra.mxu0 %v328
    %353 = vmatprep.subr.bf16.mxu0 0
    %354 = vmatpush1.bf16.msra.mxu0 0
    %355 = vmatprep.subr.bf16.mxu0 0
    %356 = vmatpush1.bf16.msra.mxu0 0
    %357 = vmatprep.subr.bf16.mxu0 0
    %358 = vmatpush1.bf16.msra.mxu0 0
    %359 = vmatprep.subr.bf16.mxu0 0
    %360 = vmatpush1.bf16.msra.mxu0 0
    %361 = vmatprep.subr.bf16.mxu0 0
    %362 = vmatpush1.bf16.msra.mxu0 0
    %363 = vmatprep.subr.bf16.mxu0 0
    %364 = vmatpush1.bf16.msra.mxu0 0
    %365 = vmatprep.subr.bf16.mxu0 0
    %366 = vmatpush1.bf16.msra.mxu0 0
    %367 = vmatprep.subr.bf16.mxu0 0
    %368 = vmatpush1.bf16.msra.mxu0 0
    %369 = vmatprep.mubr.bf16.mxu0 0
    %370 = vmatmul.mubr.bf16.gmra.mrb[0].mxu0 %v268
    %v371 = vpop.f32.mrb[0].mxu0
    %v372 = vadd.f32 %v288, %v371
    %v373 = vpop.f32.mrb[0].mxu0
    %v374 = vpop.f32.mrb[0].mxu0
    %v375 = vadd.f32 %v288, %v374
    %v376 = vpop.f32.mrb[0].mxu0
    %377 = vdwg.mxu0
    %v378 = vsub.f32 0.0, %v372
    %v379 = vsub.f32 0.0, %v375
    %v380 = vmul.f32 %v378, 1.442695
    %v381 = vpow.pop %v380
    %v382 = vmul.f32 %v379, 1.442695
    %v383 = vpow.pop %v382
    %v384 = vadd.f32 %v381, 1.0
    %v385 = vadd.f32 %v383, 1.0
    %v386 = vrcp.pop %v384
    %v387 = vrcp.pop %v385
    %388 = vst [vmem:[#allocation10] sm:$0xff] %v386
    %389 = vst [vmem:[#allocation10 + $0x8] sm:$0xff] %v387
    // Predicated region
    $region38: #{tpu_custom_call.1} parent=1 // pred_check
      _
    $region39: #{tpu_custom_call.1} parent=1 // pred_check_branch
      %391 = sbr.rel (0) target = $region41
    $region40: #{tpu_custom_call.1} parent=1 // pred_region
      %s393 = ssub.s32 256, 256
      %394 = vsyncadd [#allocation4], %s393
      %s395 = sshll.u32 [#allocation10], 4
      %s396 = int_to_ptr.vmem [resolvable:$true] %s395
      %401 = dma.vmem_to_hbm [thread:$0]  %s396, 256, %s5, [#allocation4], 128, 128, 8
    $region41: #{tpu_custom_call.1} parent=1 // pred_fallthru
      _
    // Predicated region
    $region42: #{tpu_custom_call.1} parent=1 // pred_check
      _
    $region43: #{tpu_custom_call.1} parent=1 // pred_check_branch
      %403 = sbr.rel (0) target = $region45
    $region44: #{tpu_custom_call.1} parent=1 // pred_region
      %404 = dma.done [#allocation4], 256
    $region45: #{tpu_custom_call.1} parent=1 // pred_fallthru
      _
    %405 = vsyncpa [#allocation3], 1
    %406 = vsyncpa [#allocation6], 1
    %407 = vsyncpa [#allocation9], 1
    %408 = vsyncpa [#allocation4], 1

</llo_original>
